<compile_context>
chip_gen: v7x
topology: tpu7x:2x2x1
jax: 0.10.0
libtpu: 0.0.40
codegen_flags: <defaults>
</compile_context>

<pallas_src>
import functools

import jax
import jax.numpy as jnp
from jax.experimental import pallas as pl
from jax.experimental.pallas import tpu as pltpu


def _pose_embed_kernel(x_ref, w_ref, b_ref, o_ref):
    # x_ref: [TM, K], w_ref: [K, Np], b_ref: [1, Np] (f32), o_ref: [TM, Np]
    acc = jnp.dot(x_ref[...], w_ref[...], preferred_element_type=jnp.float32)
    o_ref[...] = (acc + b_ref[...]).astype(o_ref.dtype)


def _round_up(x, m):
    return ((x + m - 1) // m) * m


def _choose_tm(m, k, n_pad, in_bytes, out_bytes, sublane):
    # Keep double-buffered x/out tiles plus the resident (double-buffered) W & bias
    # well under the default scoped-VMEM limit on every generation
    # (16 MiB v5e, 32 MiB v6e / v7x; v7x has only 64 MiB physical VMEM).
    # ~1024 rows is already past the ~85% HBM-roofline knee, so cap there.
    budget = 12 * 1024 * 1024
    fixed = 2 * (k * n_pad * in_bytes + n_pad * 4)           # W + bias (double-buffered)
    per_row = 2 * (k * in_bytes + n_pad * out_bytes)         # x tile + out tile (double-buffered)
    tm = max(sublane, (budget - fixed) // max(per_row, 1))
    tm = min(tm, 1024, _round_up(m, sublane))
    return max(sublane, (tm // sublane) * sublane)


def input_process_forward(x, weight, bias, *, compute_dtype=None):
    """x: [bs, njoints, nfeats, nframes]; weight: [latent_dim, input_feats] (PyTorch
    convention); bias: [latent_dim]. Returns [nframes, bs, latent_dim]."""
    bs, njoints, nfeats, nframes = x.shape
    K = njoints * nfeats
    N = weight.shape[0]
    out_dtype = x.dtype
    cdt = jnp.dtype(compute_dtype) if compute_dtype is not None else jnp.dtype(x.dtype)

    # Glue: frames-first permute + flatten joints*feats (matches torch permute/reshape).
    # allow_input_fusion below lets XLA fold this into the kernel's input DMA under jit.
    x2d = jnp.transpose(x, (3, 0, 1, 2)).reshape(nframes * bs, K).astype(cdt)
    w_t = weight.T.astype(cdt)                       # [K, N]
    b2d = bias.astype(jnp.float32).reshape(1, N)     # bias kept in f32

    M = nframes * bs
    sublane = 16 if cdt == jnp.bfloat16 else 8
    N_pad = _round_up(N, 128)                        # lane-dense output stores
    in_bytes = cdt.itemsize
    out_bytes = jnp.dtype(out_dtype).itemsize
    TM = _choose_tm(M, K, N_pad, in_bytes, out_bytes, sublane)
    M_pad = _round_up(M, TM)                         # no ragged tail block

    if M_pad != M:
        x2d = jnp.pad(x2d, ((0, M_pad - M), (0, 0)))
    if N_pad != N:
        w_t = jnp.pad(w_t, ((0, 0), (0, N_pad - N)))
        b2d = jnp.pad(b2d, ((0, 0), (0, N_pad - N)))

    grid = (M_pad // TM,)
    cost = pl.CostEstimate(
        flops=2 * M * K * N,
        bytes_accessed=M * K * in_bytes + K * N * in_bytes + N * 4 + M * N * out_bytes,
        transcendentals=0,
    )

    out2d = pl.pallas_call(
        _pose_embed_kernel,
        out_shape=jax.ShapeDtypeStruct((M_pad, N_pad), out_dtype),
        grid=grid,
        in_specs=[
            pl.BlockSpec((TM, K), lambda i: (i, 0)),       # streamed over M
            pl.BlockSpec((K, N_pad), lambda i: (0, 0)),    # resident weight
            pl.BlockSpec((1, N_pad), lambda i: (0, 0)),    # resident bias
        ],
        out_specs=pl.BlockSpec((TM, N_pad), lambda i: (i, 0)),
        compiler_params=pltpu.CompilerParams(
            dimension_semantics=("parallel",),             # megacore sharding on v7x
            allow_input_fusion=[True, False, False],       # fuse transpose/reshape/pad into x DMA
        ),
        cost_estimate=cost,
    )(x2d, w_t, b2d)

    out2d = out2d[:M, :N]
    return out2d.reshape(nframes, bs, N)


if __name__ == "__main__":
    # Small shapes consistent with the module's forward.
    bs, njoints, nfeats, nframes = 2, 4, 4, 8
    input_feats = njoints * nfeats        # 16
    latent_dim = 32

    key = jax.random.PRNGKey(0)
    kx, kw, kb = jax.random.split(key, 3)

    x = jax.random.normal(kx, (bs, njoints, nfeats, nframes), dtype=jnp.float32)
    bound = 1.0 / (input_feats ** 0.5)
    weight = jax.random.uniform(kw, (latent_dim, input_feats),
                                minval=-bound, maxval=bound, dtype=jnp.float32)
    bias = jax.random.uniform(kb, (latent_dim,),
                              minval=-bound, maxval=bound, dtype=jnp.float32)

    # f32 path (exact module semantics).
    fwd = jax.jit(input_process_forward)
    out = jax.block_until_ready(fwd(x, weight, bias))

    # Reference in plain JAX (same math as the PyTorch forward).
    ref = jnp.einsum(
        "fbk,nk->fbn",
        jnp.transpose(x, (3, 0, 1, 2)).reshape(nframes, bs, input_feats),
        weight,
    ) + bias
    assert out.shape == (nframes, bs, latent_dim)
    assert jnp.allclose(out, ref, atol=1e-5, rtol=1e-5)

    # bf16-stream variant (halves HBM read traffic; f32 accumulate + bias add).
    fwd_bf16 = jax.jit(functools.partial(input_process_forward,
                                         compute_dtype=jnp.bfloat16))
    out_bf16 = jax.block_until_ready(fwd_bf16(x, weight, bias))
    assert out_bf16.shape == (nframes, bs, latent_dim)
    assert jnp.allclose(out_bf16, ref, atol=2e-2, rtol=2e-2)

    print("KERNEL_OK")
</pallas_src>

<mosaic_0001>
module attributes {stable_mosaic.version = 11 : i64} {
  func.func @_pose_embed_kernel(%arg0: i32, %arg1: memref<16x16xf32, #tpu.memory_space<vmem>>, %arg2: memref<16x128xf32, #tpu.memory_space<vmem>>, %arg3: memref<1x128xf32, #tpu.memory_space<vmem>>, %arg4: memref<16x128xf32, #tpu.memory_space<vmem>>) attributes {dimension_semantics = [#tpu.dimension_semantics<parallel>], iteration_bounds = array<i64: 1>, scalar_prefetch = 0 : i64, scratch_operands = 0 : i64, tpu.core_type = #tpu.core_type<tc>, window_params = [{transform_indices = @transform_0, window_bounds = array<i64: 16, 16>}, {pipeline_mode = #tpu.pipeline_mode<synchronous>, transform_indices = @transform_1, window_bounds = array<i64: 16, 128>}, {pipeline_mode = #tpu.pipeline_mode<synchronous>, transform_indices = @transform_2, window_bounds = array<i64: 1, 128>}, {transform_indices = @transform_3, window_bounds = array<i64: 16, 128>}]} {
    %c0 = arith.constant 0 : index
    %c0_0 = arith.constant 0 : index
    %0 = vector.load %arg1[%c0, %c0_0] : memref<16x16xf32, #tpu.memory_space<vmem>>, vector<16x16xf32>
    %c0_1 = arith.constant 0 : index
    %c0_2 = arith.constant 0 : index
    %1 = vector.load %arg2[%c0_1, %c0_2] : memref<16x128xf32, #tpu.memory_space<vmem>>, vector<16x128xf32>
    %cst = arith.constant dense<0.000000e+00> : vector<16x128xf32>
    %2 = tpu.matmul %0, %1, %cst {dimension_numbers = #tpu.dot_dimension_numbers<[1], [0], [0], [1], [0, 0, 1, 1], [], []>} : vector<16x16xf32>, vector<16x128xf32>, vector<16x128xf32> -> vector<16x128xf32>
    %c0_3 = arith.constant 0 : index
    %c0_4 = arith.constant 0 : index
    %3 = vector.load %arg3[%c0_3, %c0_4] : memref<1x128xf32, #tpu.memory_space<vmem>>, vector<1x128xf32>
    %4 = vector.broadcast %3 : vector<1x128xf32> to vector<16x128xf32>
    %5 = arith.addf %2, %4 : vector<16x128xf32>
    %c0_5 = arith.constant 0 : index
    %c0_6 = arith.constant 0 : index
    %6 = vector.load %arg4[%c0_5, %c0_6] : memref<16x128xf32, #tpu.memory_space<vmem>>, vector<16x128xf32>
    tpu.vector_store %arg4[%c0_5, %c0_6], %5 {strides = array<i32>} : memref<16x128xf32, #tpu.memory_space<vmem>>, vector<16x128xf32>,
    return
  }
  func.func @transform_0(%arg0: i32) -> (i32, i32) {
    %c0_i32 = arith.constant 0 : i32
    %c0_i32_0 = arith.constant 0 : i32
    return %arg0, %c0_i32 : i32, i32
  }
  func.func @transform_1(%arg0: i32) -> (i32, i32) {
    %c0_i32 = arith.constant 0 : i32
    %c0_i32_0 = arith.constant 0 : i32
    %c0_i32_1 = arith.constant 0 : i32
    return %c0_i32, %c0_i32_0 : i32, i32
  }
  func.func @transform_2(%arg0: i32) -> (i32, i32) {
    %c0_i32 = arith.constant 0 : i32
    %c0_i32_0 = arith.constant 0 : i32
    %c0_i32_1 = arith.constant 0 : i32
    return %c0_i32, %c0_i32_0 : i32, i32
  }
  func.func @transform_3(%arg0: i32) -> (i32, i32) {
    %c0_i32 = arith.constant 0 : i32
    %c0_i32_0 = arith.constant 0 : i32
    return %arg0, %c0_i32 : i32, i32
  }
}

</mosaic_0001>

<llo_original>
// kernel: input_process_forward.1
$region0: #{input_process_forward.1}
  #allocation0 [shape = 'u32[]', space=smem, size = 0x4, offset = 0x4, fixed_abs, tag = 'smem constant byte address 0x4 - core index']
  #allocation1 [shape = 'u32[144,128]{1,0:T(1,128)}', space=vmem, size = 0x12000, scoped, tag = 'internal scratch']
  %s0 = inlined_call_operand.vmem [shape: f32[16,16], index: 0, kind: input, shape index: {}]
  %s1 = inlined_call_operand.vmem [shape: f32[16,128], index: 1, kind: input, shape index: {}]
  %s2 = inlined_call_operand.vmem [shape: f32[1,128], index: 2, kind: input, shape index: {}]
  %s3 = inlined_call_operand.hbm [shape: f32[16,128], index: 3, kind: output, shape index: {}]
  %s4 = sld [smem:[#allocation0]]
  $region22: #{input_process_forward.1} parent=0
    _
  %s6 = ssub.s32 1, %s4
  %s7 = scalar_select 0, %s6, %s4
  $region1: #{input_process_forward.1} parent=0
    #allocation2 [shape = 'u8[8192]{0}', space=vmem, size = 0x2000, scoped, tag = 'output window, operand 0, single buffered']
    #allocation3 [shape = 's32[1]{0}', space=sflag, size = 0x4, scoped, tag = 'scoped memory for input_process_forward.1']
    %8 = vsyncpa [#allocation3], 0
    // Predicated region
    $region2: #{input_process_forward.1} parent=1 // pred_check
      _
    $region3: #{input_process_forward.1} parent=1 // pred_check_branch
      %10 = sbr.rel (0) target = $region5
    $region4: #{input_process_forward.1} parent=1 // pred_region
      _
    $region5: #{input_process_forward.1} parent=1 // pred_fallthru
      _
    // Predicated region
    $region6: #{input_process_forward.1} parent=1 // pred_check
      _
    $region7: #{input_process_forward.1} parent=1 // pred_check_branch
      %12 = sbr.rel (0) target = $region9
    $region8: #{input_process_forward.1} parent=1 // pred_region
      _
    $region9: #{input_process_forward.1} parent=1 // pred_fallthru
      _
    // Predicated region
    $region10: #{input_process_forward.1} parent=1 // pred_check
      _
    $region11: #{input_process_forward.1} parent=1 // pred_check_branch
      %14 = sbr.rel (0) target = $region13
    $region12: #{input_process_forward.1} parent=1 // pred_region
      _
    $region13: #{input_process_forward.1} parent=1 // pred_fallthru
      _
    %v15 = vld [vmem:[%s0] sm:$0xff]
    %v16 = vld [vmem:[%s0 + $0x8] sm:$0xff]
    %v17 = vld [vmem:[%s1] sm:$0xff]
    %v18 = vld [vmem:[%s1 + $0x8] sm:$0xff]
    %v19 = vld [vmem:[%s2] sm:$0x1]
    %v21 = vlaneseq
    %v22 = vshrl.u32 %v21, 7
    %v23 = vsub.s32 0, %v22
    %v24 = vrot.slane %v19, %v23
    %vm26 = vcmask 130048
    %v28 = vsel %vm26, %v15, 0
    %v31 = vsel %vm26, %v16, 0
    %33 = vmatprep.subr.mxu0 0.0
    %34 = vmatpush1.msra.mxu0 %v17
    %35 = vmatprep.subr.mxu0 0.0
    %36 = vmatpush1.msra.mxu0 %v18
    %37 = vmatprep.subr.mxu0 0.0
    %38 = vmatpush1.msra.mxu0 0.0
    %39 = vmatprep.subr.mxu0 0.0
    %40 = vmatpush1.msra.mxu0 0.0
    %41 = vmatprep.subr.mxu0 0.0
    %42 = vmatpush1.msra.mxu0 0.0
    %43 = vmatprep.subr.mxu0 0.0
    %44 = vmatpush1.msra.mxu0 0.0
    %45 = vmatprep.subr.mxu0 0.0
    %46 = vmatpush1.msra.mxu0 0.0
    %47 = vmatprep.subr.mxu0 0.0
    %48 = vmatpush1.msra.mxu0 0.0
    %49 = vmatprep.subr.mxu0 0.0
    %50 = vmatpush1.msra.mxu0 0.0
    %51 = vmatprep.subr.mxu0 0.0
    %52 = vmatpush1.msra.mxu0 0.0
    %53 = vmatprep.subr.mxu0 0.0
    %54 = vmatpush1.msra.mxu0 0.0
    %55 = vmatprep.subr.mxu0 0.0
    %56 = vmatpush1.msra.mxu0 0.0
    %57 = vmatprep.subr.mxu0 0.0
    %58 = vmatpush1.msra.mxu0 0.0
    %59 = vmatprep.subr.mxu0 0.0
    %60 = vmatpush1.msra.mxu0 0.0
    %61 = vmatprep.subr.mxu0 0.0
    %62 = vmatpush1.msra.mxu0 0.0
    %63 = vmatprep.subr.mxu0 0.0
    %64 = vmatpush1.msra.mxu0 0.0
    %65 = vmatprep.subr.mxu0 0.0
    %66 = vmatpush1.msra.mxu0 0.0
    %67 = vmatprep.subr.mxu0 0.0
    %68 = vmatpush1.msra.mxu0 0.0
    %69 = vmatprep.subr.mxu0 0.0
    %70 = vmatpush1.msra.mxu0 0.0
    %71 = vmatprep.subr.mxu0 0.0
    %72 = vmatpush1.msra.mxu0 0.0
    %73 = vmatprep.subr.mxu0 0.0
    %74 = vmatpush1.msra.mxu0 0.0
    %75 = vmatprep.subr.mxu0 0.0
    %76 = vmatpush1.msra.mxu0 0.0
    %77 = vmatprep.subr.mxu0 0.0
    %78 = vmatpush1.msra.mxu0 0.0
    %79 = vmatprep.subr.mxu0 0.0
    %80 = vmatpush1.msra.mxu0 0.0
    %81 = vmatprep.subr.mxu0 0.0
    %82 = vmatpush1.msra.mxu0 0.0
    %83 = vmatprep.subr.mxu0 0.0
    %84 = vmatpush1.msra.mxu0 0.0
    %85 = vmatprep.subr.mxu0 0.0
    %86 = vmatpush1.msra.mxu0 0.0
    %87 = vmatprep.subr.mxu0 0.0
    %88 = vmatpush1.msra.mxu0 0.0
    %89 = vmatprep.subr.mxu0 0.0
    %90 = vmatpush1.msra.mxu0 0.0
    %91 = vmatprep.subr.mxu0 0.0
    %92 = vmatpush1.msra.mxu0 0.0
    %93 = vmatprep.subr.mxu0 0.0
    %94 = vmatpush1.msra.mxu0 0.0
    %95 = vmatprep.subr.mxu0 0.0
    %96 = vmatpush1.msra.mxu0 0.0
    %97 = vmatprep.mubr.f32.mxu0 0.0
    %98 = vmatmul.mubr.f32.gmra.mrb[0].mxu0 %v28
    %v99 = vpop.f32.mrb[0].mxu0
    %v100 = vadd.f32 %v24, %v99
    %v101 = vpop.f32.mrb[0].mxu0
    %102 = vmatprep.mubr.f32.mxu0 0.0
    %103 = vmatmul.mubr.f32.gmra.mrb[0].mxu0 %v31
    %v104 = vpop.f32.mrb[0].mxu0
    %v105 = vadd.f32 %v24, %v104
    %v106 = vpop.f32.mrb[0].mxu0
    %107 = vdwg.mxu0
    %108 = vst [vmem:[#allocation2] sm:$0xff] %v100
    %109 = vst [vmem:[#allocation2 + $0x8] sm:$0xff] %v105
    // Predicated region
    $region14: #{input_process_forward.1} parent=1 // pred_check
      _
    $region15: #{input_process_forward.1} parent=1 // pred_check_branch
      %111 = sbr.rel (0) target = $region17
    $region16: #{input_process_forward.1} parent=1 // pred_region
      %s113 = ssub.s32 256, 256
      %114 = vsyncadd [#allocation3], %s113
      %s115 = sshll.u32 [#allocation2], 4
      %s116 = int_to_ptr.vmem [resolvable:$true] %s115
      %121 = dma.vmem_to_hbm [thread:$0]  %s116, 256, %s3, [#allocation3], 128, 128, 8
    $region17: #{input_process_forward.1} parent=1 // pred_fallthru
      _
    // Predicated region
    $region18: #{input_process_forward.1} parent=1 // pred_check
      _
    $region19: #{input_process_forward.1} parent=1 // pred_check_branch
      %123 = sbr.rel (0) target = $region21
    $region20: #{input_process_forward.1} parent=1 // pred_region
      %124 = dma.done [#allocation3], 256
    $region21: #{input_process_forward.1} parent=1 // pred_fallthru
      _
    %125 = vsyncpa [#allocation3], 1

</llo_original>
